<compile_context>
chip_gen: v7x
topology: tpu7x:2x2x1
jax: 0.10.0
libtpu: 0.0.40
codegen_flags: <defaults>
</compile_context>

<pallas_src>
import functools

import jax
import jax.numpy as jnp
from jax.experimental import pallas as pl
from jax.experimental.pallas import tpu as pltpu

_PRED_LANES = 8  # preds packed as int32 lanes [pred_i, pred_v, pred_f, 0...]


def _round_up(x, m):
    return ((x + m - 1) // m) * m


# ----------------------------- Pallas kernel -------------------------------

def _decoder_kernel(hid_ref, lab_ref, dA_ref, dB_ref, bAB_ref,
                    tbl_i_ref, tbl_v_ref, w_ref, b_ref,
                    logits_ref, preds_ref,
                    *, size_i, size_v, size_f):
    TN, H = hid_ref.shape
    SIp = tbl_i_ref.shape[0]
    SVp = tbl_v_ref.shape[0]
    Vpad = logits_ref.shape[1]
    NP = preds_ref.shape[1]

    dA = dA_ref[...]          # (1, H) f32
    dB = dB_ref[...]          # (1, H) f32
    bAB = bAB_ref[...]        # (1, H) f32  (= bias_A + bias_B)

    h_in = hid_ref[...]       # (TN, H)
    labels = lab_ref[...]     # (TN, 2) int32

    w = w_ref[...]            # (3H, Vpad) block-diagonal projection weights
    mm_dtype = w.dtype

    # ---- fused embedding lookup: one-hot(label) @ table on the MXU --------
    i_lab = labels[:, 0:1]
    v_lab = labels[:, 1:2]
    onehot_i = jax.lax.broadcasted_iota(jnp.int32, (TN, SIp), 1) == i_lab
    onehot_v = jax.lax.broadcasted_iota(jnp.int32, (TN, SVp), 1) == v_lab
    emb_i = jnp.dot(onehot_i.astype(mm_dtype), tbl_i_ref[...],
                    preferred_element_type=jnp.float32)       # (TN, H) f32
    emb_v = jnp.dot(onehot_v.astype(mm_dtype), tbl_v_ref[...],
                    preferred_element_type=jnp.float32)       # (TN, H) f32

    # ---- unrolled diagonal RNN (h0 == 0, so B(h0) = bias_B) ----------------
    h1 = jnp.tanh(bAB + h_in.astype(jnp.float32) * dA)
    h2 = jnp.tanh(bAB + emb_i * dA + h1 * dB)
    h3 = jnp.tanh(bAB + emb_v * dA + h2 * dB)

    # ---- fused block-diagonal output projection (one lane-dense slab) ------
    logits = (jnp.dot(h1.astype(mm_dtype), w[0 * H:1 * H, :],
                      preferred_element_type=jnp.float32)
              + jnp.dot(h2.astype(mm_dtype), w[1 * H:2 * H, :],
                        preferred_element_type=jnp.float32)
              + jnp.dot(h3.astype(mm_dtype), w[2 * H:3 * H, :],
                        preferred_element_type=jnp.float32)
              + b_ref[...])                                    # (TN, Vpad) f32
    logits_ref[...] = logits.astype(logits_ref.dtype)

    # ---- per-head argmax (masked over the fused slab) ----------------------
    lane = jax.lax.broadcasted_iota(jnp.int32, (TN, Vpad), 1)
    neg_inf = jnp.float32(-jnp.inf)

    def head_argmax(start, size):
        m = (lane >= start) & (lane < start + size)
        masked = jnp.where(m, logits, neg_inf)
        return (jnp.argmax(masked, axis=-1).astype(jnp.int32) - start)[:, None]

    pi = head_argmax(0, size_i)
    pv = head_argmax(size_i, size_v)
    pf = head_argmax(size_i + size_v, size_f)

    plane = jax.lax.broadcasted_iota(jnp.int32, (TN, NP), 1)
    preds_ref[...] = jnp.where(
        plane == 0, pi, jnp.where(plane == 1, pv, jnp.where(plane == 2, pf, 0)))


# ----------------------------- Param packing -------------------------------

def prepare_decoder_params(params, matmul_dtype=jnp.float32):
    """Pack module params into kernel-friendly layouts (done once)."""
    H = params["diag_A"].shape[0]
    assert H % 8 == 0, "hidden_size must be a multiple of 8"
    size_i = params["w_i"].shape[1]
    size_v = params["w_v"].shape[1]
    size_f = params["w_f"].shape[1]
    v_tot = size_i + size_v + size_f
    v_pad = _round_up(v_tot, 128)

    # Block-diagonal projection weight (3H, Vpad); zero off-block columns.
    w_bd = jnp.zeros((3 * H, v_pad), matmul_dtype)
    w_bd = w_bd.at[0 * H:1 * H, 0:size_i].set(params["w_i"].astype(matmul_dtype))
    w_bd = w_bd.at[1 * H:2 * H, size_i:size_i + size_v].set(
        params["w_v"].astype(matmul_dtype))
    w_bd = w_bd.at[2 * H:3 * H, size_i + size_v:v_tot].set(
        params["w_f"].astype(matmul_dtype))

    b_bd = jnp.zeros((1, v_pad), jnp.float32)
    b_bd = b_bd.at[0, 0:size_i].set(params["b_i"].astype(jnp.float32))
    b_bd = b_bd.at[0, size_i:size_i + size_v].set(params["b_v"].astype(jnp.float32))
    b_bd = b_bd.at[0, size_i + size_v:v_tot].set(params["b_f"].astype(jnp.float32))

    def pad_table(t):
        rows = _round_up(t.shape[0], 8)
        return jnp.pad(t, ((0, rows - t.shape[0]), (0, 0))).astype(matmul_dtype)

    return {
        "sizes": (size_i, size_v, size_f),
        "hidden_size": H,
        "v_pad": v_pad,
        "w_bd": w_bd,
        "b_bd": b_bd,
        "tbl_i": pad_table(params["emb_i_tbl"]),
        "tbl_v": pad_table(params["emb_v_tbl"]),
        "dA": params["diag_A"][None, :].astype(jnp.float32),
        "dB": params["diag_B"][None, :].astype(jnp.float32),
        "bAB": (params["bias_A"] + params["bias_B"])[None, :].astype(jnp.float32),
        "matmul_dtype": matmul_dtype,
    }


# ----------------------------- Kernel driver --------------------------------

def _run_decoder_kernel(hidden_flat, labels, packed, *, tile_rows=512):
    N, H = hidden_flat.shape
    size_i, size_v, size_f = packed["sizes"]
    v_pad = packed["v_pad"]

    tn = min(tile_rows, _round_up(N, 8))
    n_pad = _round_up(N, tn)
    if n_pad != N:
        hidden_flat = jnp.pad(hidden_flat, ((0, n_pad - N), (0, 0)))
        labels = jnp.pad(labels, ((0, n_pad - N), (0, 0)))
    hidden_flat = hidden_flat.astype(packed["matmul_dtype"])

    grid = (n_pad // tn,)

    kernel = functools.partial(_decoder_kernel,
                               size_i=size_i, size_v=size_v, size_f=size_f)

    def row_spec(shape):
        return pl.BlockSpec(shape, lambda i: (i, 0))

    def resident_spec(shape):
        return pl.BlockSpec(shape, lambda i: (0, 0))

    logits, preds = pl.pallas_call(
        kernel,
        out_shape=(jax.ShapeDtypeStruct((n_pad, v_pad), jnp.float32),
                   jax.ShapeDtypeStruct((n_pad, _PRED_LANES), jnp.int32)),
        grid_spec=pltpu.PrefetchScalarGridSpec(
            num_scalar_prefetch=0,
            grid=grid,
            in_specs=[
                row_spec((tn, H)),                     # hidden rows
                row_spec((tn, 2)),                     # (i, v) teacher labels
                resident_spec((1, H)),                 # diag_A
                resident_spec((1, H)),                 # diag_B
                resident_spec((1, H)),                 # bias_A + bias_B
                resident_spec(packed["tbl_i"].shape),  # embedding table i
                resident_spec(packed["tbl_v"].shape),  # embedding table v
                resident_spec(packed["w_bd"].shape),   # block-diagonal weights
                resident_spec((1, v_pad)),             # fused bias
            ],
            out_specs=(
                row_spec((tn, v_pad)),                 # lane-dense logits slab
                row_spec((tn, _PRED_LANES)),           # packed int32 preds
            ),
        ),
        compiler_params=pltpu.CompilerParams(
            dimension_semantics=("parallel",),         # shards rows on v7x 2xTC
            vmem_limit_bytes=32 * 1024 * 1024,
        ),
    )(hidden_flat, labels,
      packed["dA"], packed["dB"], packed["bAB"],
      packed["tbl_i"], packed["tbl_v"],
      packed["w_bd"], packed["b_bd"])

    return logits[:N], preds[:N]


# ------------------------------ Module glue --------------------------------

def init_params(key, hidden_size, size_i, size_v, size_f, pad_i, pad_v):
    ks = jax.random.split(key, 12)
    emb_i_tbl = jax.random.normal(ks[0], (size_i, hidden_size), jnp.float32)
    emb_v_tbl = jax.random.normal(ks[1], (size_v, hidden_size), jnp.float32)
    # padding_idx rows are zero in nn.Embedding
    emb_i_tbl = emb_i_tbl.at[pad_i].set(0.0)
    emb_v_tbl = emb_v_tbl.at[pad_v].set(0.0)

    def linear(k, fan_in, fan_out):
        kw, kb = jax.random.split(k)
        bound = 1.0 / jnp.sqrt(fan_in)
        # stored pre-transposed: (in, out)
        w = jax.random.uniform(kw, (fan_in, fan_out), jnp.float32, -bound, bound)
        b = jax.random.uniform(kb, (fan_out,), jnp.float32, -bound, bound)
        return w, b

    w_i, b_i = linear(ks[2], hidden_size, size_i)
    w_v, b_v = linear(ks[3], hidden_size, size_v)
    w_f, b_f = linear(ks[4], hidden_size, size_f)

    return {
        "emb_i_tbl": emb_i_tbl, "emb_v_tbl": emb_v_tbl,
        "w_i": w_i, "b_i": b_i,
        "w_v": w_v, "b_v": b_v,
        "w_f": w_f, "b_f": b_f,
        "diag_A": jax.random.normal(ks[5], (hidden_size,), jnp.float32),
        "bias_A": jax.random.normal(ks[6], (hidden_size,), jnp.float32),
        "diag_B": jax.random.normal(ks[7], (hidden_size,), jnp.float32),
        "bias_B": jax.random.normal(ks[8], (hidden_size,), jnp.float32),
    }


def unrolled_diagonal_rnn_decoder(params, hidden, force, *,
                                  tile_rows=512, matmul_dtype=jnp.float32):
    """Teacher-forcing forward pass.

    hidden: (seq, batch, H) float32
    force:  (seq, batch, 3) int32 subcharacter labels
    matmul_dtype: set to jnp.bfloat16 on v6e/v7x to halve HBM traffic / double
                  MXU rate (f32 accumulation kept; validate preds separately).
    Returns ((logits_i, logits_v, logits_f), (pred_i, pred_v, pred_f)).
    """
    seq, bsz, H = hidden.shape
    N = seq * bsz
    packed = prepare_decoder_params(params, matmul_dtype)
    size_i, size_v, size_f = packed["sizes"]

    labels = force[..., :2].reshape(N, 2).astype(jnp.int32)
    hidden_flat = hidden.reshape(N, H)

    logits_slab, preds_slab = _run_decoder_kernel(
        hidden_flat, labels, packed, tile_rows=tile_rows)

    li = logits_slab[:, 0:size_i].reshape(seq, bsz, size_i)
    lv = logits_slab[:, size_i:size_i + size_v].reshape(seq, bsz, size_v)
    lf = logits_slab[:, size_i + size_v:size_i + size_v + size_f].reshape(
        seq, bsz, size_f)
    pi = preds_slab[:, 0].reshape(seq, bsz)
    pv = preds_slab[:, 1].reshape(seq, bsz)
    pf = preds_slab[:, 2].reshape(seq, bsz)
    return (li, lv, lf), (pi, pv, pf)


# Pure-JAX reference for validation (mirrors the PyTorch module).
def _reference(params, hidden, force):
    i_labels = force[..., 0]
    v_labels = force[..., 1]
    emb_i = jnp.take(params["emb_i_tbl"], i_labels, axis=0)
    emb_v = jnp.take(params["emb_v_tbl"], v_labels, axis=0)

    def A(x): return params["bias_A"] + x * params["diag_A"]
    def B(x): return params["bias_B"] + x * params["diag_B"]

    h0 = jnp.zeros_like(hidden)
    h1 = jnp.tanh(A(hidden) + B(h0))
    h2 = jnp.tanh(A(emb_i) + B(h1))
    h3 = jnp.tanh(A(emb_v) + B(h2))
    li = h1 @ params["w_i"] + params["b_i"]
    lv = h2 @ params["w_v"] + params["b_v"]
    lf = h3 @ params["w_f"] + params["b_f"]
    return ((li, lv, lf),
            (jnp.argmax(li, -1).astype(jnp.int32),
             jnp.argmax(lv, -1).astype(jnp.int32),
             jnp.argmax(lf, -1).astype(jnp.int32)))


if __name__ == "__main__":
    seq, batch, hidden_size = 8, 2, 32
    size_i, size_v, size_f = 16, 24, 32
    pad_i, pad_v = 0, 0

    key = jax.random.PRNGKey(0)
    kp, kh, kf = jax.random.split(key, 3)
    params = init_params(kp, hidden_size, size_i, size_v, size_f, pad_i, pad_v)

    hidden = jax.random.normal(kh, (seq, batch, hidden_size), jnp.float32)
    ki, kv, kf2 = jax.random.split(kf, 3)
    force = jnp.stack([
        jax.random.randint(ki, (seq, batch), 0, size_i),
        jax.random.randint(kv, (seq, batch), 0, size_v),
        jax.random.randint(kf2, (seq, batch), 0, size_f),
    ], axis=-1).astype(jnp.int32)

    (li, lv, lf), (pi, pv, pf) = unrolled_diagonal_rnn_decoder(params, hidden, force)
    jax.block_until_ready((li, lv, lf, pi, pv, pf))

    (rli, rlv, rlf), (rpi, rpv, rpf) = _reference(params, hidden, force)
    assert jnp.allclose(li, rli, atol=1e-5, rtol=1e-5)
    assert jnp.allclose(lv, rlv, atol=1e-5, rtol=1e-5)
    assert jnp.allclose(lf, rlf, atol=1e-5, rtol=1e-5)
    assert jnp.array_equal(pi, rpi)
    assert jnp.array_equal(pv, rpv)
    assert jnp.array_equal(pf, rpf)

    print("KERNEL_OK")
</pallas_src>

<mosaic_0001>
module attributes {stable_mosaic.version = 11 : i64} {
  func.func @_decoder_kernel(%arg0: i32, %arg1: memref<16x32xf32, #tpu.memory_space<vmem>>, %arg2: memref<16x2xi32, #tpu.memory_space<vmem>>, %arg3: memref<1x32xf32, #tpu.memory_space<vmem>>, %arg4: memref<1x32xf32, #tpu.memory_space<vmem>>, %arg5: memref<1x32xf32, #tpu.memory_space<vmem>>, %arg6: memref<16x32xf32, #tpu.memory_space<vmem>>, %arg7: memref<24x32xf32, #tpu.memory_space<vmem>>, %arg8: memref<96x128xf32, #tpu.memory_space<vmem>>, %arg9: memref<1x128xf32, #tpu.memory_space<vmem>>, %arg10: memref<16x128xf32, #tpu.memory_space<vmem>>, %arg11: memref<16x8xi32, #tpu.memory_space<vmem>>) attributes {dimension_semantics = [#tpu.dimension_semantics<parallel>], iteration_bounds = array<i64: 1>, scalar_prefetch = 0 : i64, scratch_operands = 0 : i64, tpu.core_type = #tpu.core_type<tc>, window_params = [{transform_indices = @transform_0, window_bounds = array<i64: 16, 32>}, {transform_indices = @transform_1, window_bounds = array<i64: 16, 2>}, {pipeline_mode = #tpu.pipeline_mode<synchronous>, transform_indices = @transform_2, window_bounds = array<i64: 1, 32>}, {pipeline_mode = #tpu.pipeline_mode<synchronous>, transform_indices = @transform_3, window_bounds = array<i64: 1, 32>}, {pipeline_mode = #tpu.pipeline_mode<synchronous>, transform_indices = @transform_4, window_bounds = array<i64: 1, 32>}, {pipeline_mode = #tpu.pipeline_mode<synchronous>, transform_indices = @transform_5, window_bounds = array<i64: 16, 32>}, {pipeline_mode = #tpu.pipeline_mode<synchronous>, transform_indices = @transform_6, window_bounds = array<i64: 24, 32>}, {pipeline_mode = #tpu.pipeline_mode<synchronous>, transform_indices = @transform_7, window_bounds = array<i64: 96, 128>}, {pipeline_mode = #tpu.pipeline_mode<synchronous>, transform_indices = @transform_8, window_bounds = array<i64: 1, 128>}, {transform_indices = @transform_9, window_bounds = array<i64: 16, 128>}, {transform_indices = @transform_10, window_bounds = array<i64: 16, 8>}]} {
    %c0 = arith.constant 0 : index
    %c0_0 = arith.constant 0 : index
    %0 = vector.load %arg3[%c0, %c0_0] : memref<1x32xf32, #tpu.memory_space<vmem>>, vector<1x32xf32>
    %c0_1 = arith.constant 0 : index
    %c0_2 = arith.constant 0 : index
    %1 = vector.load %arg4[%c0_1, %c0_2] : memref<1x32xf32, #tpu.memory_space<vmem>>, vector<1x32xf32>
    %c0_3 = arith.constant 0 : index
    %c0_4 = arith.constant 0 : index
    %2 = vector.load %arg5[%c0_3, %c0_4] : memref<1x32xf32, #tpu.memory_space<vmem>>, vector<1x32xf32>
    %c0_5 = arith.constant 0 : index
    %c0_6 = arith.constant 0 : index
    %3 = vector.load %arg1[%c0_5, %c0_6] : memref<16x32xf32, #tpu.memory_space<vmem>>, vector<16x32xf32>
    %c0_7 = arith.constant 0 : index
    %c0_8 = arith.constant 0 : index
    %4 = vector.load %arg2[%c0_7, %c0_8] : memref<16x2xi32, #tpu.memory_space<vmem>>, vector<16x2xi32>
    %c0_9 = arith.constant 0 : index
    %c0_10 = arith.constant 0 : index
    %5 = vector.load %arg8[%c0_9, %c0_10] : memref<96x128xf32, #tpu.memory_space<vmem>>, vector<96x128xf32>
    %6 = vector.extract_strided_slice %4 {offsets = [0, 0], sizes = [16, 1], strides = [1, 1]} : vector<16x2xi32> to vector<16x1xi32>
    %7 = vector.extract_strided_slice %4 {offsets = [0, 1], sizes = [16, 1], strides = [1, 1]} : vector<16x2xi32> to vector<16x1xi32>
    %8 = tpu.iota {dimensions = array<i32: 1>} : vector<16x16xi32>
    %9 = vector.broadcast %6 : vector<16x1xi32> to vector<16x16xi32>
    %10 = arith.cmpi eq, %8, %9 : vector<16x16xi32>
    %11 = tpu.iota {dimensions = array<i32: 1>} : vector<16x24xi32>
    %12 = vector.broadcast %7 : vector<16x1xi32> to vector<16x24xi32>
    %13 = arith.cmpi eq, %11, %12 : vector<16x24xi32>
    %14 = arith.extui %10 : vector<16x16xi1> to vector<16x16xi32>
    %15 = arith.sitofp %14 : vector<16x16xi32> to vector<16x16xf32>
    %c0_11 = arith.constant 0 : index
    %c0_12 = arith.constant 0 : index
    %16 = vector.load %arg6[%c0_11, %c0_12] : memref<16x32xf32, #tpu.memory_space<vmem>>, vector<16x32xf32>
    %cst = arith.constant dense<0.000000e+00> : vector<16x32xf32>
    %17 = tpu.matmul %15, %16, %cst {dimension_numbers = #tpu.dot_dimension_numbers<[1], [0], [0], [1], [0, 0, 1, 1], [], []>} : vector<16x16xf32>, vector<16x32xf32>, vector<16x32xf32> -> vector<16x32xf32>
    %18 = arith.extui %13 : vector<16x24xi1> to vector<16x24xi32>
    %19 = arith.sitofp %18 : vector<16x24xi32> to vector<16x24xf32>
    %c0_13 = arith.constant 0 : index
    %c0_14 = arith.constant 0 : index
    %20 = vector.load %arg7[%c0_13, %c0_14] : memref<24x32xf32, #tpu.memory_space<vmem>>, vector<24x32xf32>
    %cst_15 = arith.constant dense<0.000000e+00> : vector<16x32xf32>
    %21 = tpu.matmul %19, %20, %cst_15 {dimension_numbers = #tpu.dot_dimension_numbers<[1], [0], [0], [1], [0, 0, 1, 1], [], []>} : vector<16x24xf32>, vector<24x32xf32>, vector<16x32xf32> -> vector<16x32xf32>
    %22 = vector.broadcast %0 : vector<1x32xf32> to vector<16x32xf32>
    %23 = arith.mulf %3, %22 : vector<16x32xf32>
    %24 = vector.broadcast %2 : vector<1x32xf32> to vector<16x32xf32>
    %25 = arith.addf %24, %23 : vector<16x32xf32>
    %26 = math.tanh %25 : vector<16x32xf32>
    %27 = vector.broadcast %0 : vector<1x32xf32> to vector<16x32xf32>
    %28 = arith.mulf %17, %27 : vector<16x32xf32>
    %29 = vector.broadcast %2 : vector<1x32xf32> to vector<16x32xf32>
    %30 = arith.addf %29, %28 : vector<16x32xf32>
    %31 = vector.broadcast %1 : vector<1x32xf32> to vector<16x32xf32>
    %32 = arith.mulf %26, %31 : vector<16x32xf32>
    %33 = arith.addf %30, %32 : vector<16x32xf32>
    %34 = math.tanh %33 : vector<16x32xf32>
    %35 = vector.broadcast %0 : vector<1x32xf32> to vector<16x32xf32>
    %36 = arith.mulf %21, %35 : vector<16x32xf32>
    %37 = vector.broadcast %2 : vector<1x32xf32> to vector<16x32xf32>
    %38 = arith.addf %37, %36 : vector<16x32xf32>
    %39 = vector.broadcast %1 : vector<1x32xf32> to vector<16x32xf32>
    %40 = arith.mulf %34, %39 : vector<16x32xf32>
    %41 = arith.addf %38, %40 : vector<16x32xf32>
    %42 = math.tanh %41 : vector<16x32xf32>
    %43 = vector.extract_strided_slice %5 {offsets = [0, 0], sizes = [32, 128], strides = [1, 1]} : vector<96x128xf32> to vector<32x128xf32>
    %cst_16 = arith.constant dense<0.000000e+00> : vector<16x128xf32>
    %44 = tpu.matmul %26, %43, %cst_16 {dimension_numbers = #tpu.dot_dimension_numbers<[1], [0], [0], [1], [0, 0, 1, 1], [], []>} : vector<16x32xf32>, vector<32x128xf32>, vector<16x128xf32> -> vector<16x128xf32>
    %45 = vector.extract_strided_slice %5 {offsets = [32, 0], sizes = [32, 128], strides = [1, 1]} : vector<96x128xf32> to vector<32x128xf32>
    %cst_17 = arith.constant dense<0.000000e+00> : vector<16x128xf32>
    %46 = tpu.matmul %34, %45, %cst_17 {dimension_numbers = #tpu.dot_dimension_numbers<[1], [0], [0], [1], [0, 0, 1, 1], [], []>} : vector<16x32xf32>, vector<32x128xf32>, vector<16x128xf32> -> vector<16x128xf32>
    %47 = arith.addf %44, %46 : vector<16x128xf32>
    %48 = vector.extract_strided_slice %5 {offsets = [64, 0], sizes = [32, 128], strides = [1, 1]} : vector<96x128xf32> to vector<32x128xf32>
    %cst_18 = arith.constant dense<0.000000e+00> : vector<16x128xf32>
    %49 = tpu.matmul %42, %48, %cst_18 {dimension_numbers = #tpu.dot_dimension_numbers<[1], [0], [0], [1], [0, 0, 1, 1], [], []>} : vector<16x32xf32>, vector<32x128xf32>, vector<16x128xf32> -> vector<16x128xf32>
    %50 = arith.addf %47, %49 : vector<16x128xf32>
    %c0_19 = arith.constant 0 : index
    %c0_20 = arith.constant 0 : index
    %51 = vector.load %arg9[%c0_19, %c0_20] : memref<1x128xf32, #tpu.memory_space<vmem>>, vector<1x128xf32>
    %52 = vector.broadcast %51 : vector<1x128xf32> to vector<16x128xf32>
    %53 = arith.addf %50, %52 : vector<16x128xf32>
    %c0_21 = arith.constant 0 : index
    %c0_22 = arith.constant 0 : index
    %54 = vector.load %arg10[%c0_21, %c0_22] : memref<16x128xf32, #tpu.memory_space<vmem>>, vector<16x128xf32>
    tpu.vector_store %arg10[%c0_21, %c0_22], %53 {strides = array<i32>} : memref<16x128xf32, #tpu.memory_space<vmem>>, vector<16x128xf32>,
    %55 = tpu.iota {dimensions = array<i32: 1>} : vector<16x128xi32>
    %c0_i32 = arith.constant 0 : i32
    %56 = vector.broadcast %c0_i32 : i32 to vector<16x128xi32>
    %57 = arith.cmpi sge, %55, %56 : vector<16x128xi32>
    %c16_i32 = arith.constant 16 : i32
    %58 = vector.broadcast %c16_i32 : i32 to vector<16x128xi32>
    %59 = arith.cmpi slt, %55, %58 : vector<16x128xi32>
    %60 = arith.andi %57, %59 : vector<16x128xi1>
    %cst_23 = arith.constant 0xFF800000 : f32
    %61 = vector.broadcast %cst_23 : f32 to vector<16x128xf32>
    %62 = arith.select %60, %53, %61 : vector<16x128xi1>, vector<16x128xf32>
    %63 = tpu.reduce_index %62 {axis = 1 : i32, kind = #tpu.reduction_kind<arg_max>} : vector<16x128xf32> -> vector<16xi32>
    %c0_i32_24 = arith.constant 0 : i32
    %64 = vector.broadcast %c0_i32_24 : i32 to vector<16xi32>
    %65 = arith.subi %63, %64 : vector<16xi32>
    %66 = vector.shape_cast %65 : vector<16xi32> to vector<16x1xi32>
    %c16_i32_25 = arith.constant 16 : i32
    %67 = vector.broadcast %c16_i32_25 : i32 to vector<16x128xi32>
    %68 = arith.cmpi sge, %55, %67 : vector<16x128xi32>
    %c40_i32 = arith.constant 40 : i32
    %69 = vector.broadcast %c40_i32 : i32 to vector<16x128xi32>
    %70 = arith.cmpi slt, %55, %69 : vector<16x128xi32>
    %71 = arith.andi %68, %70 : vector<16x128xi1>
    %cst_26 = arith.constant 0xFF800000 : f32
    %72 = vector.broadcast %cst_26 : f32 to vector<16x128xf32>
    %73 = arith.select %71, %53, %72 : vector<16x128xi1>, vector<16x128xf32>
    %74 = tpu.reduce_index %73 {axis = 1 : i32, kind = #tpu.reduction_kind<arg_max>} : vector<16x128xf32> -> vector<16xi32>
    %c16_i32_27 = arith.constant 16 : i32
    %75 = vector.broadcast %c16_i32_27 : i32 to vector<16xi32>
    %76 = arith.subi %74, %75 : vector<16xi32>
    %77 = vector.shape_cast %76 : vector<16xi32> to vector<16x1xi32>
    %c40_i32_28 = arith.constant 40 : i32
    %78 = vector.broadcast %c40_i32_28 : i32 to vector<16x128xi32>
    %79 = arith.cmpi sge, %55, %78 : vector<16x128xi32>
    %c72_i32 = arith.constant 72 : i32
    %80 = vector.broadcast %c72_i32 : i32 to vector<16x128xi32>
    %81 = arith.cmpi slt, %55, %80 : vector<16x128xi32>
    %82 = arith.andi %79, %81 : vector<16x128xi1>
    %cst_29 = arith.constant 0xFF800000 : f32
    %83 = vector.broadcast %cst_29 : f32 to vector<16x128xf32>
    %84 = arith.select %82, %53, %83 : vector<16x128xi1>, vector<16x128xf32>
    %85 = tpu.reduce_index %84 {axis = 1 : i32, kind = #tpu.reduction_kind<arg_max>} : vector<16x128xf32> -> vector<16xi32>
    %c40_i32_30 = arith.constant 40 : i32
    %86 = vector.broadcast %c40_i32_30 : i32 to vector<16xi32>
    %87 = arith.subi %85, %86 : vector<16xi32>
    %88 = vector.shape_cast %87 : vector<16xi32> to vector<16x1xi32>
    %89 = tpu.iota {dimensions = array<i32: 1>} : vector<16x8xi32>
    %c0_i32_31 = arith.constant 0 : i32
    %90 = vector.broadcast %c0_i32_31 : i32 to vector<16x8xi32>
    %91 = arith.cmpi eq, %89, %90 : vector<16x8xi32>
    %c1_i32 = arith.constant 1 : i32
    %92 = vector.broadcast %c1_i32 : i32 to vector<16x8xi32>
    %93 = arith.cmpi eq, %89, %92 : vector<16x8xi32>
    %c2_i32 = arith.constant 2 : i32
    %94 = vector.broadcast %c2_i32 : i32 to vector<16x8xi32>
    %95 = arith.cmpi eq, %89, %94 : vector<16x8xi32>
    %c0_i32_32 = arith.constant 0 : i32
    %96 = vector.shape_cast %88 : vector<16x1xi32> to vector<16x1xi32>
    %97 = vector.broadcast %96 : vector<16x1xi32> to vector<16x8xi32>
    %98 = vector.broadcast %c0_i32_32 : i32 to vector<16x8xi32>
    %99 = arith.select %95, %97, %98 : vector<16x8xi1>, vector<16x8xi32>
    %100 = vector.shape_cast %77 : vector<16x1xi32> to vector<16x1xi32>
    %101 = vector.broadcast %100 : vector<16x1xi32> to vector<16x8xi32>
    %102 = arith.select %93, %101, %99 : vector<16x8xi1>, vector<16x8xi32>
    %103 = vector.shape_cast %66 : vector<16x1xi32> to vector<16x1xi32>
    %104 = vector.broadcast %103 : vector<16x1xi32> to vector<16x8xi32>
    %105 = arith.select %91, %104, %102 : vector<16x8xi1>, vector<16x8xi32>
    %c0_33 = arith.constant 0 : index
    %c0_34 = arith.constant 0 : index
    %106 = vector.load %arg11[%c0_33, %c0_34] : memref<16x8xi32, #tpu.memory_space<vmem>>, vector<16x8xi32>
    tpu.vector_store %arg11[%c0_33, %c0_34], %105 {strides = array<i32>} : memref<16x8xi32, #tpu.memory_space<vmem>>, vector<16x8xi32>,
    return
  }
  func.func @transform_0(%arg0: i32) -> (i32, i32) {
    %c0_i32 = arith.constant 0 : i32
    %c0_i32_0 = arith.constant 0 : i32
    return %arg0, %c0_i32 : i32, i32
  }
  func.func @transform_1(%arg0: i32) -> (i32, i32) {
    %c0_i32 = arith.constant 0 : i32
    %c0_i32_0 = arith.constant 0 : i32
    return %arg0, %c0_i32 : i32, i32
  }
  func.func @transform_2(%arg0: i32) -> (i32, i32) {
    %c0_i32 = arith.constant 0 : i32
    %c0_i32_0 = arith.constant 0 : i32
    %c0_i32_1 = arith.constant 0 : i32
    return %c0_i32, %c0_i32_0 : i32, i32
  }
  func.func @transform_3(%arg0: i32) -> (i32, i32) {
    %c0_i32 = arith.constant 0 : i32
    %c0_i32_0 = arith.constant 0 : i32
    %c0_i32_1 = arith.constant 0 : i32
    return %c0_i32, %c0_i32_0 : i32, i32
  }
  func.func @transform_4(%arg0: i32) -> (i32, i32) {
    %c0_i32 = arith.constant 0 : i32
    %c0_i32_0 = arith.constant 0 : i32
    %c0_i32_1 = arith.constant 0 : i32
    return %c0_i32, %c0_i32_0 : i32, i32
  }
  func.func @transform_5(%arg0: i32) -> (i32, i32) {
    %c0_i32 = arith.constant 0 : i32
    %c0_i32_0 = arith.constant 0 : i32
    %c0_i32_1 = arith.constant 0 : i32
    return %c0_i32, %c0_i32_0 : i32, i32
  }
  func.func @transform_6(%arg0: i32) -> (i32, i32) {
    %c0_i32 = arith.constant 0 : i32
    %c0_i32_0 = arith.constant 0 : i32
    %c0_i32_1 = arith.constant 0 : i32
    return %c0_i32, %c0_i32_0 : i32, i32
  }
  func.func @transform_7(%arg0: i32) -> (i32, i32) {
    %c0_i32 = arith.constant 0 : i32
    %c0_i32_0 = arith.constant 0 : i32
    %c0_i32_1 = arith.constant 0 : i32
    return %c0_i32, %c0_i32_0 : i32, i32
  }
  func.func @transform_8(%arg0: i32) -> (i32, i32) {
    %c0_i32 = arith.constant 0 : i32
    %c0_i32_0 = arith.constant 0 : i32
    %c0_i32_1 = arith.constant 0 : i32
    return %c0_i32, %c0_i32_0 : i32, i32
  }
  func.func @transform_9(%arg0: i32) -> (i32, i32) {
    %c0_i32 = arith.constant 0 : i32
    %c0_i32_0 = arith.constant 0 : i32
    return %arg0, %c0_i32 : i32, i32
  }
  func.func @transform_10(%arg0: i32) -> (i32, i32) {
    %c0_i32 = arith.constant 0 : i32
    %c0_i32_0 = arith.constant 0 : i32
    return %arg0, %c0_i32 : i32, i32
  }
}

</mosaic_0001>

<llo_original>
// kernel: tpu_custom_call.1
$region0: #{tpu_custom_call.1}
  #allocation0 [shape = 'u32[]', space=smem, size = 0x4, offset = 0x4, fixed_abs, tag = 'smem constant byte address 0x4 - core index']
  #allocation1 [shape = 'u32[144,128]{1,0:T(1,128)}', space=vmem, size = 0x12000, scoped, tag = 'internal scratch']
  %s0 = inlined_call_operand.vmem [shape: f32[16,32], index: 0, kind: input, shape index: {}]
  %s1 = inlined_call_operand.vmem [shape: s32[16,2], index: 1, kind: input, shape index: {}]
  %s2 = inlined_call_operand.hbm [shape: f32[1,32], index: 2, kind: input, shape index: {}]
  %s3 = inlined_call_operand.hbm [shape: f32[1,32], index: 3, kind: input, shape index: {}]
  %s4 = inlined_call_operand.hbm [shape: f32[1,32], index: 4, kind: input, shape index: {}]
  %s5 = inlined_call_operand.hbm [shape: f32[16,32], index: 5, kind: input, shape index: {}]
  %s6 = inlined_call_operand.vmem [shape: f32[24,32], index: 6, kind: input, shape index: {}]
  %s7 = inlined_call_operand.hbm [shape: f32[96,128], index: 7, kind: input, shape index: {}]
  %s8 = inlined_call_operand.vmem [shape: f32[1,128], index: 8, kind: input, shape index: {}]
  %s9 = inlined_call_operand.hbm [shape: f32[16,128], index: 9, kind: output, shape index: {0}]
  %s10 = inlined_call_operand.vmem [shape: s32[16,8], index: 10, kind: output, shape index: {1}]
  %11 = xla_tuple %s9, %s10
  %s12 = sld [smem:[#allocation0]]
  $region74: #{tpu_custom_call.1} parent=0
    _
  %s14 = ssub.s32 1, %s12
  %s15 = scalar_select 0, %s14, %s12
  $region1: #{tpu_custom_call.1} parent=0
    #allocation2 [shape = 'u8[512]{0}', space=vmem, size = 0x400, scoped, tag = 'input window, operand 2, single buffered']
    #allocation3 [shape = 's32[1]{0}', space=sflag, size = 0x4, scoped, tag = 'scoped memory for tpu_custom_call.1']
    #allocation4 [shape = 's32[1]{0}', space=sflag, size = 0x4, scoped, tag = 'scoped memory for tpu_custom_call.1']
    #allocation5 [shape = 'u8[512]{0}', space=vmem, size = 0x400, scoped, tag = 'input window, operand 3, single buffered']
    #allocation6 [shape = 's32[1]{0}', space=sflag, size = 0x4, scoped, tag = 'scoped memory for tpu_custom_call.1']
    #allocation7 [shape = 'u8[512]{0}', space=vmem, size = 0x400, scoped, tag = 'input window, operand 4, single buffered']
    #allocation8 [shape = 'u8[8192]{0}', space=vmem, size = 0x2000, scoped, tag = 'input window, operand 5, single buffered']
    #allocation9 [shape = 's32[1]{0}', space=sflag, size = 0x4, scoped, tag = 'scoped memory for tpu_custom_call.1']
    #allocation10 [shape = 'u8[49152]{0}', space=vmem, size = 0xc000, scoped, tag = 'input window, operand 7, single buffered']
    #allocation11 [shape = 'u8[8192]{0}', space=vmem, size = 0x2000, scoped, tag = 'output window, operand 0, single buffered']
    %16 = vsyncpa [#allocation3], 0
    %17 = vsyncpa [#allocation6], 0
    %18 = vsyncpa [#allocation9], 0
    %19 = vsyncpa [#allocation4], 0
    // Predicated region
    $region2: #{tpu_custom_call.1} parent=1 // pred_check
      _
    $region3: #{tpu_custom_call.1} parent=1 // pred_check_branch
      %21 = sbr.rel (0) target = $region5
    $region4: #{tpu_custom_call.1} parent=1 // pred_region
      _
    $region5: #{tpu_custom_call.1} parent=1 // pred_fallthru
      _
    // Predicated region
    $region6: #{tpu_custom_call.1} parent=1 // pred_check
      _
    $region7: #{tpu_custom_call.1} parent=1 // pred_check_branch
      %23 = sbr.rel (0) target = $region9
    $region8: #{tpu_custom_call.1} parent=1 // pred_region
      _
    $region9: #{tpu_custom_call.1} parent=1 // pred_fallthru
      _
    // Predicated region
    $region10: #{tpu_custom_call.1} parent=1 // pred_check
      _
    $region11: #{tpu_custom_call.1} parent=1 // pred_check_branch
      %25 = sbr.rel (0) target = $region13
    $region12: #{tpu_custom_call.1} parent=1 // pred_region
      %s27 = ssub.s32 16, 16
      %28 = vsyncadd [#allocation3], %s27
      %s30 = sshll.u32 [#allocation2], 4
      %s31 = int_to_ptr.vmem [resolvable:$true] %s30
      %33 = dma.hbm_to_vmem [thread:$0]  %s2, 16, %s31, [#allocation3]
    $region13: #{tpu_custom_call.1} parent=1 // pred_fallthru
      _
    // Predicated region
    $region14: #{tpu_custom_call.1} parent=1 // pred_check
      _
    $region15: #{tpu_custom_call.1} parent=1 // pred_check_branch
      %35 = sbr.rel (0) target = $region17
    $region16: #{tpu_custom_call.1} parent=1 // pred_region
      %s37 = ssub.s32 16, 16
      %38 = vsyncadd [#allocation6], %s37
      %s40 = sshll.u32 [#allocation5], 4
      %s41 = int_to_ptr.vmem [resolvable:$true] %s40
      %43 = dma.hbm_to_vmem [thread:$0]  %s3, 16, %s41, [#allocation6]
    $region17: #{tpu_custom_call.1} parent=1 // pred_fallthru
      _
    // Predicated region
    $region18: #{tpu_custom_call.1} parent=1 // pred_check
      _
    $region19: #{tpu_custom_call.1} parent=1 // pred_check_branch
      %45 = sbr.rel (0) target = $region21
    $region20: #{tpu_custom_call.1} parent=1 // pred_region
      %s47 = ssub.s32 16, 16
      %48 = vsyncadd [#allocation6], %s47
      %s50 = sshll.u32 [#allocation7], 4
      %s51 = int_to_ptr.vmem [resolvable:$true] %s50
      %53 = dma.hbm_to_vmem [thread:$0]  %s4, 16, %s51, [#allocation6]
    $region21: #{tpu_custom_call.1} parent=1 // pred_fallthru
      _
    // Predicated region
    $region22: #{tpu_custom_call.1} parent=1 // pred_check
      _
    $region23: #{tpu_custom_call.1} parent=1 // pred_check_branch
      %55 = sbr.rel (0) target = $region25
    $region24: #{tpu_custom_call.1} parent=1 // pred_region
      %s57 = ssub.s32 256, 256
      %58 = vsyncadd [#allocation9], %s57
      %s59 = sshll.u32 [#allocation8], 4
      %s60 = int_to_ptr.vmem [resolvable:$true] %s59
      %65 = dma.hbm_to_vmem [thread:$0]  %s5, 256, %s60, [#allocation9], 128, 128, 8
    $region25: #{tpu_custom_call.1} parent=1 // pred_fallthru
      _
    // Predicated region
    $region26: #{tpu_custom_call.1} parent=1 // pred_check
      _
    $region27: #{tpu_custom_call.1} parent=1 // pred_check_branch
      %67 = sbr.rel (0) target = $region29
    $region28: #{tpu_custom_call.1} parent=1 // pred_region
      _
    $region29: #{tpu_custom_call.1} parent=1 // pred_fallthru
      _
    // Predicated region
    $region30: #{tpu_custom_call.1} parent=1 // pred_check
      _
    $region31: #{tpu_custom_call.1} parent=1 // pred_check_branch
      %69 = sbr.rel (0) target = $region33
    $region32: #{tpu_custom_call.1} parent=1 // pred_region
      %s71 = ssub.s32 1536, 1536
      %72 = vsyncadd [#allocation9], %s71
      %s73 = sshll.u32 [#allocation10], 4
      %s74 = int_to_ptr.vmem [resolvable:$true] %s73
      %79 = dma.hbm_to_vmem [thread:$0]  %s7, 1536, %s74, [#allocation9], 128, 128, 8
    $region33: #{tpu_custom_call.1} parent=1 // pred_fallthru
      _
    // Predicated region
    $region34: #{tpu_custom_call.1} parent=1 // pred_check
      _
    $region35: #{tpu_custom_call.1} parent=1 // pred_check_branch
      %81 = sbr.rel (0) target = $region37
    $region36: #{tpu_custom_call.1} parent=1 // pred_region
      _
    $region37: #{tpu_custom_call.1} parent=1 // pred_fallthru
      _
    // Predicated region
    $region38: #{tpu_custom_call.1} parent=1 // pred_check
      _
    $region39: #{tpu_custom_call.1} parent=1 // pred_check_branch
      %83 = sbr.rel (0) target = $region41
    $region40: #{tpu_custom_call.1} parent=1 // pred_region
      %84 = dma.done [#allocation3], 16
    $region41: #{tpu_custom_call.1} parent=1 // pred_fallthru
      _
    // Predicated region
    $region42: #{tpu_custom_call.1} parent=1 // pred_check
      _
    $region43: #{tpu_custom_call.1} parent=1 // pred_check_branch
      %86 = sbr.rel (0) target = $region45
    $region44: #{tpu_custom_call.1} parent=1 // pred_region
      %87 = dma.done [#allocation6], 16
    $region45: #{tpu_custom_call.1} parent=1 // pred_fallthru
      _
    // Predicated region
    $region46: #{tpu_custom_call.1} parent=1 // pred_check
      _
    $region47: #{tpu_custom_call.1} parent=1 // pred_check_branch
      %89 = sbr.rel (0) target = $region49
    $region48: #{tpu_custom_call.1} parent=1 // pred_region
      %90 = dma.done [#allocation6], 16
    $region49: #{tpu_custom_call.1} parent=1 // pred_fallthru
      _
    // Predicated region
    $region50: #{tpu_custom_call.1} parent=1 // pred_check
      _
    $region51: #{tpu_custom_call.1} parent=1 // pred_check_branch
      %92 = sbr.rel (0) target = $region53
    $region52: #{tpu_custom_call.1} parent=1 // pred_region
      %93 = dma.done [#allocation9], 256
    $region53: #{tpu_custom_call.1} parent=1 // pred_fallthru
      _
    // Predicated region
    $region54: #{tpu_custom_call.1} parent=1 // pred_check
      _
    $region55: #{tpu_custom_call.1} parent=1 // pred_check_branch
      %95 = sbr.rel (0) target = $region57
    $region56: #{tpu_custom_call.1} parent=1 // pred_region
      %96 = dma.done [#allocation9], 1536
    $region57: #{tpu_custom_call.1} parent=1 // pred_fallthru
      _
    %v97 = vld [vmem:[#allocation2] sm:$0x1]
    %v98 = vld [vmem:[#allocation5] sm:$0x1]
    %v99 = vld [vmem:[#allocation7] sm:$0x1]
    %v100 = vld [vmem:[%s0] sm:$0xff]
    %v101 = vld [vmem:[%s0 + $0x8] sm:$0xff]
    %v102 = vld [vmem:[%s1] sm:$0xff]
    %v103 = vld [vmem:[%s1 + $0x8] sm:$0xff]
    %v104 = vld [vmem:[#allocation10] sm:$0xff]
    %v105 = vld [vmem:[#allocation10 + $0x8] sm:$0xff]
    %v106 = vld [vmem:[#allocation10 + $0x10] sm:$0xff]
    %v107 = vld [vmem:[#allocation10 + $0x18] sm:$0xff]
    %v108 = vld [vmem:[#allocation10 + $0x20] sm:$0xff]
    %v109 = vld [vmem:[#allocation10 + $0x28] sm:$0xff]
    %v110 = vld [vmem:[#allocation10 + $0x30] sm:$0xff]
    %v111 = vld [vmem:[#allocation10 + $0x38] sm:$0xff]
    %v112 = vld [vmem:[#allocation10 + $0x40] sm:$0xff]
    %v113 = vld [vmem:[#allocation10 + $0x48] sm:$0xff]
    %v114 = vld [vmem:[#allocation10 + $0x50] sm:$0xff]
    %v115 = vld [vmem:[#allocation10 + $0x58] sm:$0xff]
    %v116 = vlaneseq
    %v117 = vand.u32 %v116, 127
    %118 = vset.pattern.permute.xlu0 0
    %119 = vperm.xlu0 %118, %v102
    %v120 = vpop.permute.xlu0 %119
    %121 = vset.pattern.permute.xlu0 0
    %122 = vperm.xlu0 %121, %v103
    %v123 = vpop.permute.xlu0 %122
    %vm124 = vcmp.eq.s32.totalorder %v117, %v120
    %vm125 = vcmp.eq.s32.totalorder %v117, %v123
    %126 = vset.pattern.permute.xlu0 1
    %127 = vperm.xlu0 %126, %v102
    %v128 = vpop.permute.xlu0 %127
    %129 = vset.pattern.permute.xlu0 1
    %130 = vperm.xlu0 %129, %v103
    %v131 = vpop.permute.xlu0 %130
    %vm132 = vcmp.eq.s32.totalorder %v117, %v128
    %vm133 = vcmp.eq.s32.totalorder %v117, %v131
    %v134 = vsel %vm124, 1, 0
    %v135 = vsel %vm125, 1, 0
    %v136 = vcvt.s32.f32 %v134
    %v137 = vcvt.s32.f32 %v135
    %v138 = vld [vmem:[#allocation8] sm:$0xff]
    %v139 = vld [vmem:[#allocation8 + $0x8] sm:$0xff]
    %vm140 = vcmask 130048
    %v142 = vsel %vm140, %v136, 0
    %v145 = vsel %vm140, %v137, 0
    %147 = vmatprep.subr.mxu0 0.0
    %148 = vmatpush1.msra.mxu0 %v138
    %149 = vmatprep.subr.mxu0 0.0
    %150 = vmatpush1.msra.mxu0 %v139
    %151 = vmatprep.subr.mxu0 0.0
    %152 = vmatpush1.msra.mxu0 0.0
    %153 = vmatprep.subr.mxu0 0.0
    %154 = vmatpush1.msra.mxu0 0.0
    %155 = vmatprep.subr.mxu0 0.0
    %156 = vmatpush1.msra.mxu0 0.0
    %157 = vmatprep.subr.mxu0 0.0
    %158 = vmatpush1.msra.mxu0 0.0
    %159 = vmatprep.subr.mxu0 0.0
    %160 = vmatpush1.msra.mxu0 0.0
    %161 = vmatprep.subr.mxu0 0.0
    %162 = vmatpush1.msra.mxu0 0.0
    %163 = vmatprep.subr.mxu0 0.0
    %164 = vmatpush1.msra.mxu0 0.0
    %165 = vmatprep.subr.mxu0 0.0
    %166 = vmatpush1.msra.mxu0 0.0
    %167 = vmatprep.subr.mxu0 0.0
    %168 = vmatpush1.msra.mxu0 0.0
    %169 = vmatprep.subr.mxu0 0.0
    %170 = vmatpush1.msra.mxu0 0.0
    %171 = vmatprep.subr.mxu0 0.0
    %172 = vmatpush1.msra.mxu0 0.0
    %173 = vmatprep.subr.mxu0 0.0
    %174 = vmatpush1.msra.mxu0 0.0
    %175 = vmatprep.subr.mxu0 0.0
    %176 = vmatpush1.msra.mxu0 0.0
    %177 = vmatprep.subr.mxu0 0.0
    %178 = vmatpush1.msra.mxu0 0.0
    %179 = vmatprep.subr.mxu0 0.0
    %180 = vmatpush1.msra.mxu0 0.0
    %181 = vmatprep.subr.mxu0 0.0
    %182 = vmatpush1.msra.mxu0 0.0
    %183 = vmatprep.subr.mxu0 0.0
    %184 = vmatpush1.msra.mxu0 0.0
    %185 = vmatprep.subr.mxu0 0.0
    %186 = vmatpush1.msra.mxu0 0.0
    %187 = vmatprep.subr.mxu0 0.0
    %188 = vmatpush1.msra.mxu0 0.0
    %189 = vmatprep.subr.mxu0 0.0
    %190 = vmatpush1.msra.mxu0 0.0
    %191 = vmatprep.subr.mxu0 0.0
    %192 = vmatpush1.msra.mxu0 0.0
    %193 = vmatprep.subr.mxu0 0.0
    %194 = vmatpush1.msra.mxu0 0.0
    %195 = vmatprep.subr.mxu0 0.0
    %196 = vmatpush1.msra.mxu0 0.0
    %197 = vmatprep.subr.mxu0 0.0
    %198 = vmatpush1.msra.mxu0 0.0
    %199 = vmatprep.subr.mxu0 0.0
    %200 = vmatpush1.msra.mxu0 0.0
    %201 = vmatprep.subr.mxu0 0.0
    %202 = vmatpush1.msra.mxu0 0.0
    %203 = vmatprep.subr.mxu0 0.0
    %204 = vmatpush1.msra.mxu0 0.0
    %205 = vmatprep.subr.mxu0 0.0
    %206 = vmatpush1.msra.mxu0 0.0
    %207 = vmatprep.subr.mxu0 0.0
    %208 = vmatpush1.msra.mxu0 0.0
    %209 = vmatprep.subr.mxu0 0.0
    %210 = vmatpush1.msra.mxu0 0.0
    %211 = vmatprep.mubr.f32.mxu0 0.0
    %212 = vmatmul.mubr.f32.gmra.mrb[0].mxu0 %v142
    %v213 = vpop.f32.mrb[0].mxu0
    %v214 = vadd.f32 0.0, %v213
    %v215 = vpop.f32.mrb[0].mxu0
    %216 = vmatprep.mubr.f32.mxu0 0.0
    %217 = vmatmul.mubr.f32.gmra.mrb[0].mxu0 %v145
    %v218 = vpop.f32.mrb[0].mxu0
    %v219 = vadd.f32 0.0, %v218
    %v220 = vpop.f32.mrb[0].mxu0
    %221 = vdwg.mxu0
    %v222 = vsel %vm132, 1, 0
    %v223 = vsel %vm133, 1, 0
    %v224 = vcvt.s32.f32 %v222
    %v225 = vcvt.s32.f32 %v223
    %v226 = vld [vmem:[%s6] sm:$0xff]
    %v227 = vld [vmem:[%s6 + $0x8] sm:$0xff]
    %v228 = vld [vmem:[%s6 + $0x10] sm:$0xff]
    %vm229 = vcmask 195584
    %v231 = vsel %vm229, %v224, 0
    %v234 = vsel %vm229, %v225, 0
    %236 = vmatprep.subr.mxu0 0.0
    %237 = vmatpush1.msra.mxu0 %v226
    %238 = vmatprep.subr.mxu0 0.0
    %239 = vmatpush1.msra.mxu0 %v227
    %240 = vmatprep.subr.mxu0 0.0
    %241 = vmatpush1.msra.mxu0 %v228
    %242 = vmatprep.subr.mxu0 0.0
    %243 = vmatpush1.msra.mxu0 0.0
    %244 = vmatprep.subr.mxu0 0.0
    %245 = vmatpush1.msra.mxu0 0.0
    %246 = vmatprep.subr.mxu0 0.0
    %247 = vmatpush1.msra.mxu0 0.0
    %248 = vmatprep.subr.mxu0 0.0
    %249 = vmatpush1.msra.mxu0 0.0
    %250 = vmatprep.subr.mxu0 0.0
    %251 = vmatpush1.msra.mxu0 0.0
    %252 = vmatprep.subr.mxu0 0.0
    %253 = vmatpush1.msra.mxu0 0.0
    %254 = vmatprep.subr.mxu0 0.0
    %255 = vmatpush1.msra.mxu0 0.0
    %256 = vmatprep.subr.mxu0 0.0
    %257 = vmatpush1.msra.mxu0 0.0
    %258 = vmatprep.subr.mxu0 0.0
    %259 = vmatpush1.msra.mxu0 0.0
    %260 = vmatprep.subr.mxu0 0.0
    %261 = vmatpush1.msra.mxu0 0.0
    %262 = vmatprep.subr.mxu0 0.0
    %263 = vmatpush1.msra.mxu0 0.0
    %264 = vmatprep.subr.mxu0 0.0
    %265 = vmatpush1.msra.mxu0 0.0
    %266 = vmatprep.subr.mxu0 0.0
    %267 = vmatpush1.msra.mxu0 0.0
    %268 = vmatprep.subr.mxu0 0.0
    %269 = vmatpush1.msra.mxu0 0.0
    %270 = vmatprep.subr.mxu0 0.0
    %271 = vmatpush1.msra.mxu0 0.0
    %272 = vmatprep.subr.mxu0 0.0
    %273 = vmatpush1.msra.mxu0 0.0
    %274 = vmatprep.subr.mxu0 0.0
    %275 = vmatpush1.msra.mxu0 0.0
    %276 = vmatprep.subr.mxu0 0.0
    %277 = vmatpush1.msra.mxu0 0.0
    %278 = vmatprep.subr.mxu0 0.0
    %279 = vmatpush1.msra.mxu0 0.0
    %280 = vmatprep.subr.mxu0 0.0
    %281 = vmatpush1.msra.mxu0 0.0
    %282 = vmatprep.subr.mxu0 0.0
    %283 = vmatpush1.msra.mxu0 0.0
    %284 = vmatprep.subr.mxu0 0.0
    %285 = vmatpush1.msra.mxu0 0.0
    %286 = vmatprep.subr.mxu0 0.0
    %287 = vmatpush1.msra.mxu0 0.0
    %288 = vmatprep.subr.mxu0 0.0
    %289 = vmatpush1.msra.mxu0 0.0
    %290 = vmatprep.subr.mxu0 0.0
    %291 = vmatpush1.msra.mxu0 0.0
    %292 = vmatprep.subr.mxu0 0.0
    %293 = vmatpush1.msra.mxu0 0.0
    %294 = vmatprep.subr.mxu0 0.0
    %295 = vmatpush1.msra.mxu0 0.0
    %296 = vmatprep.subr.mxu0 0.0
    %297 = vmatpush1.msra.mxu0 0.0
    %298 = vmatprep.subr.mxu0 0.0
    %299 = vmatpush1.msra.mxu0 0.0
    %300 = vmatprep.mubr.f32.mxu0 0.0
    %301 = vmatmul.mubr.f32.gmra.mrb[0].mxu0 %v231
    %v302 = vpop.f32.mrb[0].mxu0
    %v303 = vadd.f32 0.0, %v302
    %v304 = vpop.f32.mrb[0].mxu0
    %305 = vmatprep.mubr.f32.mxu0 0.0
    %306 = vmatmul.mubr.f32.gmra.mrb[0].mxu0 %v234
    %v307 = vpop.f32.mrb[0].mxu0
    %v308 = vadd.f32 0.0, %v307
    %v309 = vpop.f32.mrb[0].mxu0
    %310 = vdwg.mxu0
    %v312 = vlaneseq
    %v313 = vshrl.u32 %v312, 7
    %v314 = vsub.s32 0, %v313
    %v315 = vrot.slane %v97, %v314
    %v317 = vmul.f32 %v100, %v315
    %v318 = vmul.f32 %v101, %v315
    %v320 = vlaneseq
    %v321 = vshrl.u32 %v320, 7
    %v322 = vsub.s32 0, %v321
    %v323 = vrot.slane %v99, %v322
    %v325 = vadd.f32 %v323, %v317
    %v326 = vadd.f32 %v323, %v318
    %v327 = vtanh.pop %v325
    %v328 = vtanh.pop %v326
    %v329 = vmul.f32 %v214, %v315
    %v330 = vmul.f32 %v219, %v315
    %v331 = vadd.f32 %v323, %v329
    %v332 = vadd.f32 %v323, %v330
    %v334 = vlaneseq
    %v335 = vshrl.u32 %v334, 7
    %v336 = vsub.s32 0, %v335
    %v337 = vrot.slane %v98, %v336
    %v339 = vmul.f32 %v327, %v337
    %v340 = vmul.f32 %v328, %v337
    %v341 = vadd.f32 %v331, %v339
    %v342 = vadd.f32 %v332, %v340
    %v343 = vtanh.pop %v341
    %v344 = vtanh.pop %v342
    %v345 = vmul.f32 %v303, %v315
    %v346 = vmul.f32 %v308, %v315
    %v347 = vadd.f32 %v323, %v345
    %v348 = vadd.f32 %v323, %v346
    %v349 = vmul.f32 %v343, %v337
    %v350 = vmul.f32 %v344, %v337
    %v351 = vadd.f32 %v347, %v349
    %v352 = vadd.f32 %v348, %v350
    %v353 = vtanh.pop %v351
    %v354 = vtanh.pop %v352
    %vm355 = vcmask 261120
    %v357 = vsel %vm355, %v343, 0
    %v360 = vsel %vm355, %v344, 0
    %362 = vmatprep.subr.mxu0 0.0
    %363 = vmatpush1.msra.mxu0 %v108
    %364 = vmatprep.subr.mxu0 0.0
    %365 = vmatpush1.msra.mxu0 %v109
    %366 = vmatprep.subr.mxu0 0.0
    %367 = vmatpush1.msra.mxu0 %v110
    %368 = vmatprep.subr.mxu0 0.0
    %369 = vmatpush1.msra.mxu0 %v111
    %370 = vmatprep.subr.mxu0 0.0
    %371 = vmatpush1.msra.mxu0 0.0
    %372 = vmatprep.subr.mxu0 0.0
    %373 = vmatpush1.msra.mxu0 0.0
    %374 = vmatprep.subr.mxu0 0.0
    %375 = vmatpush1.msra.mxu0 0.0
    %376 = vmatprep.subr.mxu0 0.0
    %377 = vmatpush1.msra.mxu0 0.0
    %378 = vmatprep.subr.mxu0 0.0
    %379 = vmatpush1.msra.mxu0 0.0
    %380 = vmatprep.subr.mxu0 0.0
    %381 = vmatpush1.msra.mxu0 0.0
    %382 = vmatprep.subr.mxu0 0.0
    %383 = vmatpush1.msra.mxu0 0.0
    %384 = vmatprep.subr.mxu0 0.0
    %385 = vmatpush1.msra.mxu0 0.0
    %386 = vmatprep.subr.mxu0 0.0
    %387 = vmatpush1.msra.mxu0 0.0
    %388 = vmatprep.subr.mxu0 0.0
    %389 = vmatpush1.msra.mxu0 0.0
    %390 = vmatprep.subr.mxu0 0.0
    %391 = vmatpush1.msra.mxu0 0.0
    %392 = vmatprep.subr.mxu0 0.0
    %393 = vmatpush1.msra.mxu0 0.0
    %394 = vmatprep.subr.mxu0 0.0
    %395 = vmatpush1.msra.mxu0 0.0
    %396 = vmatprep.subr.mxu0 0.0
    %397 = vmatpush1.msra.mxu0 0.0
    %398 = vmatprep.subr.mxu0 0.0
    %399 = vmatpush1.msra.mxu0 0.0
    %400 = vmatprep.subr.mxu0 0.0
    %401 = vmatpush1.msra.mxu0 0.0
    %402 = vmatprep.subr.mxu0 0.0
    %403 = vmatpush1.msra.mxu0 0.0
    %404 = vmatprep.subr.mxu0 0.0
    %405 = vmatpush1.msra.mxu0 0.0
    %406 = vmatprep.subr.mxu0 0.0
    %407 = vmatpush1.msra.mxu0 0.0
    %408 = vmatprep.subr.mxu0 0.0
    %409 = vmatpush1.msra.mxu0 0.0
    %410 = vmatprep.subr.mxu0 0.0
    %411 = vmatpush1.msra.mxu0 0.0
    %412 = vmatprep.subr.mxu0 0.0
    %413 = vmatpush1.msra.mxu0 0.0
    %414 = vmatprep.subr.mxu0 0.0
    %415 = vmatpush1.msra.mxu0 0.0
    %416 = vmatprep.subr.mxu0 0.0
    %417 = vmatpush1.msra.mxu0 0.0
    %418 = vmatprep.subr.mxu0 0.0
    %419 = vmatpush1.msra.mxu0 0.0
    %420 = vmatprep.subr.mxu0 0.0
    %421 = vmatpush1.msra.mxu0 0.0
    %422 = vmatprep.subr.mxu0 0.0
    %423 = vmatpush1.msra.mxu0 0.0
    %424 = vmatprep.subr.mxu0 0.0
    %425 = vmatpush1.msra.mxu0 0.0
    %426 = vmatprep.mubr.f32.mxu0 0.0
    %427 = vmatmul.mubr.f32.gmra.mrb[0].mxu0 %v357
    %v428 = vpop.f32.mrb[0].mxu0
    %v429 = vadd.f32 0.0, %v428
    %v430 = vpop.f32.mrb[0].mxu0
    %431 = vmatprep.mubr.f32.mxu0 0.0
    %432 = vmatmul.mubr.f32.gmra.mrb[0].mxu0 %v360
    %v433 = vpop.f32.mrb[0].mxu0
    %v434 = vadd.f32 0.0, %v433
    %v435 = vpop.f32.mrb[0].mxu0
    %436 = vdwg.mxu0
    %v438 = vsel %vm355, %v327, 0
    %v441 = vsel %vm355, %v328, 0
    %443 = vmatprep.subr.mxu0 0.0
    %444 = vmatpush1.msra.mxu0 %v104
    %445 = vmatprep.subr.mxu0 0.0
    %446 = vmatpush1.msra.mxu0 %v105
    %447 = vmatprep.subr.mxu0 0.0
    %448 = vmatpush1.msra.mxu0 %v106
    %449 = vmatprep.subr.mxu0 0.0
    %450 = vmatpush1.msra.mxu0 %v107
    %451 = vmatprep.subr.mxu0 0.0
    %452 = vmatpush1.msra.mxu0 0.0
    %453 = vmatprep.subr.mxu0 0.0
    %454 = vmatpush1.msra.mxu0 0.0
    %455 = vmatprep.subr.mxu0 0.0
    %456 = vmatpush1.msra.mxu0 0.0
    %457 = vmatprep.subr.mxu0 0.0
    %458 = vmatpush1.msra.mxu0 0.0
    %459 = vmatprep.subr.mxu0 0.0
    %460 = vmatpush1.msra.mxu0 0.0
    %461 = vmatprep.subr.mxu0 0.0
    %462 = vmatpush1.msra.mxu0 0.0
    %463 = vmatprep.subr.mxu0 0.0
    %464 = vmatpush1.msra.mxu0 0.0
    %465 = vmatprep.subr.mxu0 0.0
    %466 = vmatpush1.msra.mxu0 0.0
    %467 = vmatprep.subr.mxu0 0.0
    %468 = vmatpush1.msra.mxu0 0.0
    %469 = vmatprep.subr.mxu0 0.0
    %470 = vmatpush1.msra.mxu0 0.0
    %471 = vmatprep.subr.mxu0 0.0
    %472 = vmatpush1.msra.mxu0 0.0
    %473 = vmatprep.subr.mxu0 0.0
    %474 = vmatpush1.msra.mxu0 0.0
    %475 = vmatprep.subr.mxu0 0.0
    %476 = vmatpush1.msra.mxu0 0.0
    %477 = vmatprep.subr.mxu0 0.0
    %478 = vmatpush1.msra.mxu0 0.0
    %479 = vmatprep.subr.mxu0 0.0
    %480 = vmatpush1.msra.mxu0 0.0
    %481 = vmatprep.subr.mxu0 0.0
    %482 = vmatpush1.msra.mxu0 0.0
    %483 = vmatprep.subr.mxu0 0.0
    %484 = vmatpush1.msra.mxu0 0.0
    %485 = vmatprep.subr.mxu0 0.0
    %486 = vmatpush1.msra.mxu0 0.0
    %487 = vmatprep.subr.mxu0 0.0
    %488 = vmatpush1.msra.mxu0 0.0
    %489 = vmatprep.subr.mxu0 0.0
    %490 = vmatpush1.msra.mxu0 0.0
    %491 = vmatprep.subr.mxu0 0.0
    %492 = vmatpush1.msra.mxu0 0.0
    %493 = vmatprep.subr.mxu0 0.0
    %494 = vmatpush1.msra.mxu0 0.0
    %495 = vmatprep.subr.mxu0 0.0
    %496 = vmatpush1.msra.mxu0 0.0
    %497 = vmatprep.subr.mxu0 0.0
    %498 = vmatpush1.msra.mxu0 0.0
    %499 = vmatprep.subr.mxu0 0.0
    %500 = vmatpush1.msra.mxu0 0.0
    %501 = vmatprep.subr.mxu0 0.0
    %502 = vmatpush1.msra.mxu0 0.0
    %503 = vmatprep.subr.mxu0 0.0
    %504 = vmatpush1.msra.mxu0 0.0
    %505 = vmatprep.subr.mxu0 0.0
    %506 = vmatpush1.msra.mxu0 0.0
    %507 = vmatprep.mubr.f32.mxu0 0.0
    %508 = vmatmul.mubr.f32.gmra.mrb[0].mxu0 %v438
    %v509 = vpop.f32.mrb[0].mxu0
    %v510 = vadd.f32 %v429, %v509
    %v511 = vpop.f32.mrb[0].mxu0
    %512 = vmatprep.mubr.f32.mxu0 0.0
    %513 = vmatmul.mubr.f32.gmra.mrb[0].mxu0 %v441
    %v514 = vpop.f32.mrb[0].mxu0
    %v515 = vadd.f32 %v434, %v514
    %v516 = vpop.f32.mrb[0].mxu0
    %517 = vdwg.mxu0
    %v519 = vsel %vm355, %v353, 0
    %v522 = vsel %vm355, %v354, 0
    %524 = vmatprep.subr.mxu0 0.0
    %525 = vmatpush1.msra.mxu0 %v112
    %526 = vmatprep.subr.mxu0 0.0
    %527 = vmatpush1.msra.mxu0 %v113
    %528 = vmatprep.subr.mxu0 0.0
    %529 = vmatpush1.msra.mxu0 %v114
    %530 = vmatprep.subr.mxu0 0.0
    %531 = vmatpush1.msra.mxu0 %v115
    %532 = vmatprep.subr.mxu0 0.0
    %533 = vmatpush1.msra.mxu0 0.0
    %534 = vmatprep.subr.mxu0 0.0
    %535 = vmatpush1.msra.mxu0 0.0
    %536 = vmatprep.subr.mxu0 0.0
    %537 = vmatpush1.msra.mxu0 0.0
    %538 = vmatprep.subr.mxu0 0.0
    %539 = vmatpush1.msra.mxu0 0.0
    %540 = vmatprep.subr.mxu0 0.0
    %541 = vmatpush1.msra.mxu0 0.0
    %542 = vmatprep.subr.mxu0 0.0
    %543 = vmatpush1.msra.mxu0 0.0
    %544 = vmatprep.subr.mxu0 0.0
    %545 = vmatpush1.msra.mxu0 0.0
    %546 = vmatprep.subr.mxu0 0.0
    %547 = vmatpush1.msra.mxu0 0.0
    %548 = vmatprep.subr.mxu0 0.0
    %549 = vmatpush1.msra.mxu0 0.0
    %550 = vmatprep.subr.mxu0 0.0
    %551 = vmatpush1.msra.mxu0 0.0
    %552 = vmatprep.subr.mxu0 0.0
    %553 = vmatpush1.msra.mxu0 0.0
    %554 = vmatprep.subr.mxu0 0.0
    %555 = vmatpush1.msra.mxu0 0.0
    %556 = vmatprep.subr.mxu0 0.0
    %557 = vmatpush1.msra.mxu0 0.0
    %558 = vmatprep.subr.mxu0 0.0
    %559 = vmatpush1.msra.mxu0 0.0
    %560 = vmatprep.subr.mxu0 0.0
    %561 = vmatpush1.msra.mxu0 0.0
    %562 = vmatprep.subr.mxu0 0.0
    %563 = vmatpush1.msra.mxu0 0.0
    %564 = vmatprep.subr.mxu0 0.0
    %565 = vmatpush1.msra.mxu0 0.0
    %566 = vmatprep.subr.mxu0 0.0
    %567 = vmatpush1.msra.mxu0 0.0
    %568 = vmatprep.subr.mxu0 0.0
    %569 = vmatpush1.msra.mxu0 0.0
    %570 = vmatprep.subr.mxu0 0.0
    %571 = vmatpush1.msra.mxu0 0.0
    %572 = vmatprep.subr.mxu0 0.0
    %573 = vmatpush1.msra.mxu0 0.0
    %574 = vmatprep.subr.mxu0 0.0
    %575 = vmatpush1.msra.mxu0 0.0
    %576 = vmatprep.subr.mxu0 0.0
    %577 = vmatpush1.msra.mxu0 0.0
    %578 = vmatprep.subr.mxu0 0.0
    %579 = vmatpush1.msra.mxu0 0.0
    %580 = vmatprep.subr.mxu0 0.0
    %581 = vmatpush1.msra.mxu0 0.0
    %582 = vmatprep.subr.mxu0 0.0
    %583 = vmatpush1.msra.mxu0 0.0
    %584 = vmatprep.subr.mxu0 0.0
    %585 = vmatpush1.msra.mxu0 0.0
    %586 = vmatprep.subr.mxu0 0.0
    %587 = vmatpush1.msra.mxu0 0.0
    %588 = vmatprep.mubr.f32.mxu0 0.0
    %589 = vmatmul.mubr.f32.gmra.mrb[0].mxu0 %v519
    %v590 = vpop.f32.mrb[0].mxu0
    %v591 = vadd.f32 0.0, %v590
    %v592 = vpop.f32.mrb[0].mxu0
    %593 = vmatprep.mubr.f32.mxu0 0.0
    %594 = vmatmul.mubr.f32.gmra.mrb[0].mxu0 %v522
    %v595 = vpop.f32.mrb[0].mxu0
    %v596 = vadd.f32 0.0, %v595
    %v597 = vpop.f32.mrb[0].mxu0
    %598 = vdwg.mxu0
    %v599 = vadd.f32 %v510, %v591
    %v600 = vadd.f32 %v515, %v596
    %v601 = vld [vmem:[%s8] sm:$0x1]
    %v603 = vlaneseq
    %v604 = vshrl.u32 %v603, 7
    %v605 = vsub.s32 0, %v604
    %v606 = vrot.slane %v601, %v605
    %v608 = vadd.f32 %v599, %v606
    %v609 = vadd.f32 %v600, %v606
    %610 = vst [vmem:[#allocation11] sm:$0xff] %v608
    %611 = vst [vmem:[#allocation11 + $0x8] sm:$0xff] %v609
    %vm612 = vcmp.ge.s32.totalorder %v117, 0
    %vm613 = vcmp.lt.s32.totalorder %v117, 16
    %vm614 = vmand %vm612, %vm613
    %v615 = vsel %vm614, %v608, -inf
    %v616 = vsel %vm614, %v609, -inf
    %617 = vmax.index.xlane.f32.xlu0 %v615
    %v618 = vpop.xlane.xlu0 %617
    %619 = vmax.index.xlane.f32.xlu0 %v616
    %v620 = vpop.xlane.xlu0 %619
    %vm621 = vcmp.ge.s32.totalorder %v117, 16
    %vm622 = vcmp.lt.s32.totalorder %v117, 40
    %vm623 = vmand %vm621, %vm622
    %v624 = vsel %vm623, %v608, -inf
    %v625 = vsel %vm623, %v609, -inf
    %626 = vmax.index.xlane.f32.xlu0 %v624
    %v627 = vpop.xlane.xlu0 %626
    %628 = vmax.index.xlane.f32.xlu0 %v625
    %v629 = vpop.xlane.xlu0 %628
    %v630 = vsub.s32 %v627, 16
    %v631 = vsub.s32 %v629, 16
    %vm632 = vcmp.ge.s32.totalorder %v117, 40
    %vm633 = vcmp.lt.s32.totalorder %v117, 72
    %vm634 = vmand %vm632, %vm633
    %v635 = vsel %vm634, %v608, -inf
    %v636 = vsel %vm634, %v609, -inf
    %637 = vmax.index.xlane.f32.xlu0 %v635
    %v638 = vpop.xlane.xlu0 %637
    %639 = vmax.index.xlane.f32.xlu0 %v636
    %v640 = vpop.xlane.xlu0 %639
    %v641 = vsub.s32 %v638, 40
    %v642 = vsub.s32 %v640, 40
    %vm643 = vcmp.eq.s32.totalorder %v117, 0
    %vm644 = vcmp.eq.s32.totalorder %v117, 1
    %vm645 = vcmp.eq.s32.totalorder %v117, 2
    %v646 = vsel %vm645, %v641, 0
    %v647 = vsel %vm645, %v642, 0
    %v648 = vsel %vm644, %v630, %v646
    %v649 = vsel %vm644, %v631, %v647
    %v650 = vsel %vm643, %v618, %v648
    %v651 = vsel %vm643, %v620, %v649
    %vm652 = vcmask 64512
    %653 = vst.msk [vmem:[%s10] sm:$0xff] %vm652, %v650
    %654 = vst.msk [vmem:[%s10 + $0x8] sm:$0xff] %vm652, %v651
    // Predicated region
    $region58: #{tpu_custom_call.1} parent=1 // pred_check
      _
    $region59: #{tpu_custom_call.1} parent=1 // pred_check_branch
      %656 = sbr.rel (0) target = $region61
    $region60: #{tpu_custom_call.1} parent=1 // pred_region
      %s658 = ssub.s32 256, 256
      %659 = vsyncadd [#allocation4], %s658
      %s660 = sshll.u32 [#allocation11], 4
      %s661 = int_to_ptr.vmem [resolvable:$true] %s660
      %666 = dma.vmem_to_hbm [thread:$0]  %s661, 256, %s9, [#allocation4], 128, 128, 8
    $region61: #{tpu_custom_call.1} parent=1 // pred_fallthru
      _
    // Predicated region
    $region62: #{tpu_custom_call.1} parent=1 // pred_check
      _
    $region63: #{tpu_custom_call.1} parent=1 // pred_check_branch
      %668 = sbr.rel (0) target = $region65
    $region64: #{tpu_custom_call.1} parent=1 // pred_region
      _
    $region65: #{tpu_custom_call.1} parent=1 // pred_fallthru
      _
    // Predicated region
    $region66: #{tpu_custom_call.1} parent=1 // pred_check
      _
    $region67: #{tpu_custom_call.1} parent=1 // pred_check_branch
      %670 = sbr.rel (0) target = $region69
    $region68: #{tpu_custom_call.1} parent=1 // pred_region
      %671 = dma.done [#allocation4], 256
    $region69: #{tpu_custom_call.1} parent=1 // pred_fallthru
      _
    // Predicated region
    $region70: #{tpu_custom_call.1} parent=1 // pred_check
      _
    $region71: #{tpu_custom_call.1} parent=1 // pred_check_branch
      %673 = sbr.rel (0) target = $region73
    $region72: #{tpu_custom_call.1} parent=1 // pred_region
      _
    $region73: #{tpu_custom_call.1} parent=1 // pred_fallthru
      _
    %674 = vsyncpa [#allocation3], 1
    %675 = vsyncpa [#allocation6], 1
    %676 = vsyncpa [#allocation9], 1
    %677 = vsyncpa [#allocation4], 1

</llo_original>
